<compile_context>
chip_gen: v7x
topology: tpu7x:2x2x1
jax: 0.10.0
libtpu: 0.0.40
codegen_flags: <defaults>
</compile_context>

<pallas_src>
import jax
import jax.numpy as jnp
from jax.experimental import pallas as pl
from jax.experimental.pallas import tpu as pltpu

HIDDEN = 512


def _round_up(x, m):
    return ((x + m - 1) // m) * m


def _vmem_limit_bytes():
    """Per-generation VMEM budget with headroom for compiler-internal scratch:
    ~3/4 of per-core VMEM, capped at 100 MiB (v5e/v6e: 128 MiB/core ->
    ~96-100 MiB; v7x: 64 MiB/core -> ~48 MiB). Conservative 48 MiB fallback."""
    default = 48 * 1024 * 1024
    try:
        cap = getattr(pltpu.get_tpu_info(), "vmem_capacity_bytes", None)
        if not cap:
            return default
        return int(min(cap * 3 // 4, 100 * 1024 * 1024))
    except Exception:
        return default


def _pick_batch_tile(B, tb_max):
    """MXU/roofline-friendly batch tile: multiples of 256 (v6e/v7x MXU) when
    possible, else 128 (v5e), else sublane-aligned; keeps >=2 tiles for large B
    so the 'parallel' axis can shard across v7x's two TensorCores."""
    tb_max = max(8, min(int(tb_max), 1024))
    if B >= 2 * tb_max:
        return tb_max
    if B >= 1024:
        return max(256, ((B // 2) // 256) * 256)   # >= 2 tiles
    if B >= 256:
        return 256
    if B >= 128:
        return 128
    return _round_up(B, 8)                         # tiny batch: one aligned tile


def _mlp_kernel_resident(x_ref, w1_ref, b1_ref, w2_ref, b2_ref, o_ref):
    """Whole forward for one batch tile; w1/b1/w2/b2 are VMEM-resident."""
    # f32 -> bf16 cast happens here on the VPU (no separate wrapper XLA pass).
    x = x_ref[...].astype(jnp.bfloat16)
    h = jnp.dot(x, w1_ref[...], preferred_element_type=jnp.float32)
    h = jax.nn.sigmoid(h + b1_ref[...])            # Dropout(p=0.5) == identity (eval)
    out = jnp.dot(h.astype(jnp.bfloat16), w2_ref[...],
                  preferred_element_type=jnp.float32)
    o_ref[...] = (out + b2_ref[...]).astype(o_ref.dtype)


def _mlp_kernel_ktiled(x_ref, w1_ref, b1_ref, w2_ref, b2_ref, o_ref, acc_ref):
    """Fallback for very large D_in: stream w1 in K slices, accumulate layer 1
    in an f32 scratch (seeded with b1), finalize on the last K step."""
    k = pl.program_id(1)

    @pl.when(k == 0)
    def _init():
        # Seed with the layer-1 bias: removes the bias add from the serialized
        # finalize step.
        acc_ref[...] = jnp.broadcast_to(b1_ref[...], acc_ref.shape)

    acc_ref[...] += jnp.dot(x_ref[...].astype(jnp.bfloat16), w1_ref[...],
                            preferred_element_type=jnp.float32)

    @pl.when(k == pl.num_programs(1) - 1)
    def _finalize():
        h = jax.nn.sigmoid(acc_ref[...])
        out = jnp.dot(h.astype(jnp.bfloat16), w2_ref[...],
                      preferred_element_type=jnp.float32)
        o_ref[...] = (out + b2_ref[...]).astype(o_ref.dtype)


def mlp_forward(x, w1, b1, w2, b2, *, tb_max=1024, tk_max=2048,
                w1_resident_max_bytes=None):
    """Forward pass of the PyTorch `mlp` module (eval mode).

    x  : (B, C, D_in) float32
    w1 : (D_in, 512), w2 : (512, D_out)  -- pre-transposed, ideally stored bf16
    b1 : (512,), b2 : (D_out,)           -- float32
    Returns (B, D_out) float32.
    """
    x2d = x[:, 0, :]                       # channel select + flatten (layout glue)
    B, D_in = x2d.shape
    H = w1.shape[1]
    D_out = w2.shape[1]

    # Weights in bf16 (MXU-native, halves weight HBM traffic); these casts are
    # no-ops when the model state is already stored bf16 (see init_params).
    w1_bf = w1 if w1.dtype == jnp.bfloat16 else w1.astype(jnp.bfloat16)
    w2_bf = w2 if w2.dtype == jnp.bfloat16 else w2.astype(jnp.bfloat16)
    b1_f = jnp.asarray(b1, jnp.float32).reshape(1, H)
    b2_f = jnp.asarray(b2, jnp.float32).reshape(1, D_out)

    # Lane-dense output: pad D_out to a multiple of 128 (unmasked stores),
    # sliced back off at the end.
    D_out_p = _round_up(D_out, 128)
    if D_out_p != D_out:
        w2_bf = jnp.pad(w2_bf, ((0, 0), (0, D_out_p - D_out)))
        b2_f = jnp.pad(b2_f, ((0, 0), (0, D_out_p - D_out)))

    vmem_limit = _vmem_limit_bytes()

    # Resident-w1 fast path whenever w1 fits comfortably (#1 traffic lever:
    # otherwise w1 is re-streamed from HBM once per batch tile).
    if w1_resident_max_bytes is None:
        w1_resident_max_bytes = int(0.4 * vmem_limit)
    use_resident = (D_in * H * 2) <= w1_resident_max_bytes

    tb = _pick_batch_tile(B, tb_max)
    if use_resident:
        def ws(tb_):  # VMEM working set (pipeline double-buffers in/out blocks)
            return (2 * D_in * H * 2 + 2 * H * D_out_p * 2
                    + 2 * tb_ * D_in * 4 + 2 * tb_ * D_out_p * 4
                    + tb_ * H * 4 + 8 * (H + D_out_p))
    else:
        tk = min(_round_up(min(tk_max, D_in), 128), _round_up(D_in, 128))
        def ws(tb_):
            return (2 * tb_ * tk * 4 + 2 * tk * H * 2 + 2 * H * D_out_p * 2
                    + 2 * tb_ * D_out_p * 4 + tb_ * H * 4 + 8 * (H + D_out_p))
    while tb > 8 and ws(tb) > int(0.85 * vmem_limit):
        tb = _round_up(tb // 2, 8)

    # cdiv-style batch padding (zero rows are inert and sliced off at the end).
    B_pad = _round_up(B, tb)
    if B_pad != B:
        x2d = jnp.pad(x2d, ((0, B_pad - B), (0, 0)))
    grid_b = B_pad // tb

    if use_resident:
        out_p = pl.pallas_call(
            _mlp_kernel_resident,
            out_shape=jax.ShapeDtypeStruct((B_pad, D_out_p), jnp.float32),
            grid_spec=pltpu.PrefetchScalarGridSpec(
                num_scalar_prefetch=0,
                grid=(grid_b,),
                in_specs=[
                    # Streamed f32 activation tile (cast to bf16 in-kernel).
                    pl.BlockSpec((tb, D_in), lambda i: (i, 0)),
                    # Constant-index operands: DMA'd once, stay VMEM-resident.
                    pl.BlockSpec((D_in, H), lambda i: (0, 0)),
                    pl.BlockSpec((1, H), lambda i: (0, 0)),
                    pl.BlockSpec((H, D_out_p), lambda i: (0, 0)),
                    pl.BlockSpec((1, D_out_p), lambda i: (0, 0)),
                ],
                out_specs=pl.BlockSpec((tb, D_out_p), lambda i: (i, 0)),
            ),
            compiler_params=pltpu.CompilerParams(
                dimension_semantics=("parallel",),
                vmem_limit_bytes=vmem_limit,
            ),
        )(x2d, w1_bf, b1_f, w2_bf, b2_f)
    else:
        # Pad D_in so the K grid divides evenly (zero columns/rows are inert).
        D_in_p = _round_up(D_in, tk)
        if D_in_p != D_in:
            x2d = jnp.pad(x2d, ((0, 0), (0, D_in_p - D_in)))
            w1_bf = jnp.pad(w1_bf, ((0, D_in_p - D_in), (0, 0)))
        nk = D_in_p // tk
        out_p = pl.pallas_call(
            _mlp_kernel_ktiled,
            out_shape=jax.ShapeDtypeStruct((B_pad, D_out_p), jnp.float32),
            grid_spec=pltpu.PrefetchScalarGridSpec(
                num_scalar_prefetch=0,
                grid=(grid_b, nk),                       # reduction axis last
                in_specs=[
                    pl.BlockSpec((tb, tk), lambda i, k: (i, k)),
                    pl.BlockSpec((tk, H), lambda i, k: (k, 0)),
                    pl.BlockSpec((1, H), lambda i, k: (0, 0)),
                    pl.BlockSpec((H, D_out_p), lambda i, k: (0, 0)),
                    pl.BlockSpec((1, D_out_p), lambda i, k: (0, 0)),
                ],
                out_specs=pl.BlockSpec((tb, D_out_p), lambda i, k: (i, 0)),
                scratch_shapes=[pltpu.VMEM((tb, H), jnp.float32)],
            ),
            compiler_params=pltpu.CompilerParams(
                dimension_semantics=("parallel", "arbitrary"),
                vmem_limit_bytes=vmem_limit,
            ),
        )(x2d, w1_bf, b1_f, w2_bf, b2_f)

    return out_p[:B, :D_out]


def init_params(key, d_in, d_out, hidden=HIDDEN):
    """PyTorch-Linear-style init U(-1/sqrt(fan_in), 1/sqrt(fan_in)).
    Weights are stored pre-transposed (fan_in, fan_out) and in bf16 (model
    state kept in the kernel's compute dtype -> no per-call cast pass);
    biases stay f32."""
    k1, k2, k3, k4 = jax.random.split(key, 4)
    bound1 = 1.0 / jnp.sqrt(d_in)
    bound2 = 1.0 / jnp.sqrt(hidden)
    w1 = jax.random.uniform(k1, (d_in, hidden), jnp.float32,
                            -bound1, bound1).astype(jnp.bfloat16)
    b1 = jax.random.uniform(k2, (hidden,), jnp.float32, -bound1, bound1)
    w2 = jax.random.uniform(k3, (hidden, d_out), jnp.float32,
                            -bound2, bound2).astype(jnp.bfloat16)
    b2 = jax.random.uniform(k4, (d_out,), jnp.float32, -bound2, bound2)
    return w1, b1, w2, b2


if __name__ == "__main__":
    key = jax.random.PRNGKey(0)
    k_x, k_p = jax.random.split(key)

    B, C, D_in, D_out = 8, 3, 256, 128
    x = jax.random.normal(k_x, (B, C, D_in), jnp.float32)
    w1, b1, w2, b2 = init_params(k_p, D_in, D_out)

    # Resident-w1 fast path (default for these sizes).
    out = jax.block_until_ready(mlp_forward(x, w1, b1, w2, b2))
    assert out.shape == (B, D_out) and out.dtype == jnp.float32

    # Also exercise the K-tiled streaming fallback (forced) on the same inputs.
    out_kt = jax.block_until_ready(
        mlp_forward(x, w1, b1, w2, b2, tk_max=128, w1_resident_max_bytes=0))
    assert out_kt.shape == (B, D_out)

    # Reference 1: same bf16 operand quantization as the kernel, f32 math (tight).
    x_f = x[:, 0, :]
    w1_f = w1.astype(jnp.float32)          # weights stored bf16 -> exact upcast
    w2_f = w2.astype(jnp.float32)
    b1_r = b1.reshape(1, -1)
    b2_r = b2.reshape(1, -1)
    h_ref = jax.nn.sigmoid(
        x_f.astype(jnp.bfloat16).astype(jnp.float32) @ w1_f + b1_r)
    ref_matched = h_ref.astype(jnp.bfloat16).astype(jnp.float32) @ w2_f + b2_r
    assert jnp.allclose(out, ref_matched, atol=2e-3, rtol=2e-3)
    assert jnp.allclose(out_kt, ref_matched, atol=2e-3, rtol=2e-3)

    # Reference 2: plain f32 math with the (bf16-stored) weights (loose check).
    ref_f32 = jax.nn.sigmoid(x_f @ w1_f + b1_r) @ w2_f + b2_r
    assert jnp.allclose(out, ref_f32, atol=5e-2, rtol=5e-2)

    print("KERNEL_OK")
</pallas_src>

<mosaic_0001>
module attributes {stable_mosaic.version = 11 : i64} {
  func.func @_mlp_kernel_resident(%arg0: i32, %arg1: memref<8x256xf32, #tpu.memory_space<vmem>>, %arg2: memref<256x512xbf16, #tpu.memory_space<vmem>>, %arg3: memref<1x512xf32, #tpu.memory_space<vmem>>, %arg4: memref<512x128xbf16, #tpu.memory_space<vmem>>, %arg5: memref<1x128xf32, #tpu.memory_space<vmem>>, %arg6: memref<8x128xf32, #tpu.memory_space<vmem>>) attributes {dimension_semantics = [#tpu.dimension_semantics<parallel>], iteration_bounds = array<i64: 1>, scalar_prefetch = 0 : i64, scratch_operands = 0 : i64, tpu.core_type = #tpu.core_type<tc>, window_params = [{transform_indices = @transform_0, window_bounds = array<i64: 8, 256>}, {pipeline_mode = #tpu.pipeline_mode<synchronous>, transform_indices = @transform_1, window_bounds = array<i64: 256, 512>}, {pipeline_mode = #tpu.pipeline_mode<synchronous>, transform_indices = @transform_2, window_bounds = array<i64: 1, 512>}, {pipeline_mode = #tpu.pipeline_mode<synchronous>, transform_indices = @transform_3, window_bounds = array<i64: 512, 128>}, {pipeline_mode = #tpu.pipeline_mode<synchronous>, transform_indices = @transform_4, window_bounds = array<i64: 1, 128>}, {transform_indices = @transform_5, window_bounds = array<i64: 8, 128>}]} {
    %c0 = arith.constant 0 : index
    %c0_0 = arith.constant 0 : index
    %0 = vector.load %arg1[%c0, %c0_0] : memref<8x256xf32, #tpu.memory_space<vmem>>, vector<8x256xf32>
    %1 = arith.truncf %0 : vector<8x256xf32> to vector<8x256xbf16>
    %c0_1 = arith.constant 0 : index
    %c0_2 = arith.constant 0 : index
    %2 = vector.load %arg2[%c0_1, %c0_2] : memref<256x512xbf16, #tpu.memory_space<vmem>>, vector<256x512xbf16>
    %cst = arith.constant dense<0.000000e+00> : vector<8x512xf32>
    %3 = tpu.matmul %1, %2, %cst {dimension_numbers = #tpu.dot_dimension_numbers<[1], [0], [0], [1], [0, 0, 1, 1], [], []>} : vector<8x256xbf16>, vector<256x512xbf16>, vector<8x512xf32> -> vector<8x512xf32>
    %c0_3 = arith.constant 0 : index
    %c0_4 = arith.constant 0 : index
    %4 = vector.load %arg3[%c0_3, %c0_4] : memref<1x512xf32, #tpu.memory_space<vmem>>, vector<1x512xf32>
    %5 = vector.broadcast %4 : vector<1x512xf32> to vector<8x512xf32>
    %6 = arith.addf %3, %5 : vector<8x512xf32>
    %7 = arith.negf %6 : vector<8x512xf32>
    %8 = math.exp %7 : vector<8x512xf32>
    %cst_5 = arith.constant 1.000000e+00 : f32
    %9 = vector.broadcast %cst_5 : f32 to vector<8x512xf32>
    %10 = arith.addf %9, %8 : vector<8x512xf32>
    %11 = arith.divf %9, %10 : vector<8x512xf32>
    %12 = arith.truncf %11 : vector<8x512xf32> to vector<8x512xbf16>
    %c0_6 = arith.constant 0 : index
    %c0_7 = arith.constant 0 : index
    %13 = vector.load %arg4[%c0_6, %c0_7] : memref<512x128xbf16, #tpu.memory_space<vmem>>, vector<512x128xbf16>
    %cst_8 = arith.constant dense<0.000000e+00> : vector<8x128xf32>
    %14 = tpu.matmul %12, %13, %cst_8 {dimension_numbers = #tpu.dot_dimension_numbers<[1], [0], [0], [1], [0, 0, 1, 1], [], []>} : vector<8x512xbf16>, vector<512x128xbf16>, vector<8x128xf32> -> vector<8x128xf32>
    %c0_9 = arith.constant 0 : index
    %c0_10 = arith.constant 0 : index
    %15 = vector.load %arg5[%c0_9, %c0_10] : memref<1x128xf32, #tpu.memory_space<vmem>>, vector<1x128xf32>
    %16 = vector.broadcast %15 : vector<1x128xf32> to vector<8x128xf32>
    %17 = arith.addf %14, %16 : vector<8x128xf32>
    %c0_11 = arith.constant 0 : index
    %c0_12 = arith.constant 0 : index
    %18 = vector.load %arg6[%c0_11, %c0_12] : memref<8x128xf32, #tpu.memory_space<vmem>>, vector<8x128xf32>
    tpu.vector_store %arg6[%c0_11, %c0_12], %17 {strides = array<i32>} : memref<8x128xf32, #tpu.memory_space<vmem>>, vector<8x128xf32>,
    return
  }
  func.func @transform_0(%arg0: i32) -> (i32, i32) {
    %c0_i32 = arith.constant 0 : i32
    %c0_i32_0 = arith.constant 0 : i32
    return %arg0, %c0_i32 : i32, i32
  }
  func.func @transform_1(%arg0: i32) -> (i32, i32) {
    %c0_i32 = arith.constant 0 : i32
    %c0_i32_0 = arith.constant 0 : i32
    %c0_i32_1 = arith.constant 0 : i32
    return %c0_i32, %c0_i32_0 : i32, i32
  }
  func.func @transform_2(%arg0: i32) -> (i32, i32) {
    %c0_i32 = arith.constant 0 : i32
    %c0_i32_0 = arith.constant 0 : i32
    %c0_i32_1 = arith.constant 0 : i32
    return %c0_i32, %c0_i32_0 : i32, i32
  }
  func.func @transform_3(%arg0: i32) -> (i32, i32) {
    %c0_i32 = arith.constant 0 : i32
    %c0_i32_0 = arith.constant 0 : i32
    %c0_i32_1 = arith.constant 0 : i32
    return %c0_i32, %c0_i32_0 : i32, i32
  }
  func.func @transform_4(%arg0: i32) -> (i32, i32) {
    %c0_i32 = arith.constant 0 : i32
    %c0_i32_0 = arith.constant 0 : i32
    %c0_i32_1 = arith.constant 0 : i32
    return %c0_i32, %c0_i32_0 : i32, i32
  }
  func.func @transform_5(%arg0: i32) -> (i32, i32) {
    %c0_i32 = arith.constant 0 : i32
    %c0_i32_0 = arith.constant 0 : i32
    return %arg0, %c0_i32 : i32, i32
  }
}

</mosaic_0001>

<llo_original>
// kernel: tpu_custom_call.1
$region0: #{tpu_custom_call.1}
  #allocation0 [shape = 'u32[]', space=smem, size = 0x4, offset = 0x4, fixed_abs, tag = 'smem constant byte address 0x4 - core index']
  #allocation1 [shape = 'u32[144,128]{1,0:T(1,128)}', space=vmem, size = 0x12000, scoped, tag = 'internal scratch']
  %s0 = inlined_call_operand.hbm [shape: f32[8,256], index: 0, kind: input, shape index: {}]
  %s1 = inlined_call_operand.hbm [shape: bf16[256,512], index: 1, kind: input, shape index: {}]
  %s2 = inlined_call_operand.vmem [shape: f32[1,512], index: 2, kind: input, shape index: {}]
  %s3 = inlined_call_operand.hbm [shape: bf16[512,128], index: 3, kind: input, shape index: {}]
  %s4 = inlined_call_operand.vmem [shape: f32[1,128], index: 4, kind: input, shape index: {}]
  %s5 = inlined_call_operand.hbm [shape: f32[8,128], index: 5, kind: output, shape index: {}]
  %s6 = sld [smem:[#allocation0]]
  $region42: #{tpu_custom_call.1} parent=0
    _
  %s8 = ssub.s32 1, %s6
  %s9 = scalar_select 0, %s8, %s6
  $region1: #{tpu_custom_call.1} parent=0
    #allocation2 [shape = 'u8[8192]{0}', space=vmem, size = 0x2000, scoped, tag = 'input window, operand 0, single buffered']
    #allocation3 [shape = 's32[1]{0}', space=sflag, size = 0x4, scoped, tag = 'scoped memory for tpu_custom_call.1']
    #allocation4 [shape = 's32[1]{0}', space=sflag, size = 0x4, scoped, tag = 'scoped memory for tpu_custom_call.1']
    #allocation5 [shape = 'u8[262144]{0}', space=vmem, size = 0x40000, scoped, tag = 'input window, operand 1, single buffered']
    #allocation6 [shape = 's32[1]{0}', space=sflag, size = 0x4, scoped, tag = 'scoped memory for tpu_custom_call.1']
    #allocation7 [shape = 'u8[131072]{0}', space=vmem, size = 0x20000, scoped, tag = 'input window, operand 3, single buffered']
    #allocation8 [shape = 'u8[4096]{0}', space=vmem, size = 0x1000, scoped, tag = 'output window, operand 0, single buffered']
    %10 = vsyncpa [#allocation3], 0
    %11 = vsyncpa [#allocation6], 0
    %12 = vsyncpa [#allocation4], 0
    // Predicated region
    $region2: #{tpu_custom_call.1} parent=1 // pred_check
      _
    $region3: #{tpu_custom_call.1} parent=1 // pred_check_branch
      %14 = sbr.rel (0) target = $region5
    $region4: #{tpu_custom_call.1} parent=1 // pred_region
      %s16 = ssub.s32 256, 256
      %17 = vsyncadd [#allocation3], %s16
      %s19 = sshll.u32 [#allocation2], 4
      %s20 = int_to_ptr.vmem [resolvable:$true] %s19
      %22 = dma.hbm_to_vmem [thread:$0]  %s0, 256, %s20, [#allocation3]
    $region5: #{tpu_custom_call.1} parent=1 // pred_fallthru
      _
    // Predicated region
    $region6: #{tpu_custom_call.1} parent=1 // pred_check
      _
    $region7: #{tpu_custom_call.1} parent=1 // pred_check_branch
      %24 = sbr.rel (0) target = $region9
    $region8: #{tpu_custom_call.1} parent=1 // pred_region
      %s26 = ssub.s32 8192, 8192
      %27 = vsyncadd [#allocation6], %s26
      %s28 = sshll.u32 [#allocation5], 4
      %s29 = int_to_ptr.vmem [resolvable:$true] %s28
      %34 = dma.hbm_to_vmem [thread:$0]  %s1, 8192, %s29, [#allocation6], 256, 256, 16
    $region9: #{tpu_custom_call.1} parent=1 // pred_fallthru
      _
    // Predicated region
    $region10: #{tpu_custom_call.1} parent=1 // pred_check
      _
    $region11: #{tpu_custom_call.1} parent=1 // pred_check_branch
      %36 = sbr.rel (0) target = $region13
    $region12: #{tpu_custom_call.1} parent=1 // pred_region
      _
    $region13: #{tpu_custom_call.1} parent=1 // pred_fallthru
      _
    // Predicated region
    $region14: #{tpu_custom_call.1} parent=1 // pred_check
      _
    $region15: #{tpu_custom_call.1} parent=1 // pred_check_branch
      %38 = sbr.rel (0) target = $region17
    $region16: #{tpu_custom_call.1} parent=1 // pred_region
      %s40 = ssub.s32 4096, 4096
      %41 = vsyncadd [#allocation6], %s40
      %s42 = sshll.u32 [#allocation7], 4
      %s43 = int_to_ptr.vmem [resolvable:$true] %s42
      %48 = dma.hbm_to_vmem [thread:$0]  %s3, 4096, %s43, [#allocation6], 64, 64, 4
    $region17: #{tpu_custom_call.1} parent=1 // pred_fallthru
      _
    // Predicated region
    $region18: #{tpu_custom_call.1} parent=1 // pred_check
      _
    $region19: #{tpu_custom_call.1} parent=1 // pred_check_branch
      %50 = sbr.rel (0) target = $region21
    $region20: #{tpu_custom_call.1} parent=1 // pred_region
      _
    $region21: #{tpu_custom_call.1} parent=1 // pred_fallthru
      _
    // Predicated region
    $region22: #{tpu_custom_call.1} parent=1 // pred_check
      _
    $region23: #{tpu_custom_call.1} parent=1 // pred_check_branch
      %52 = sbr.rel (0) target = $region25
    $region24: #{tpu_custom_call.1} parent=1 // pred_region
      %53 = dma.done [#allocation3], 256
    $region25: #{tpu_custom_call.1} parent=1 // pred_fallthru
      _
    // Predicated region
    $region26: #{tpu_custom_call.1} parent=1 // pred_check
      _
    $region27: #{tpu_custom_call.1} parent=1 // pred_check_branch
      %55 = sbr.rel (0) target = $region29
    $region28: #{tpu_custom_call.1} parent=1 // pred_region
      %56 = dma.done [#allocation6], 8192
    $region29: #{tpu_custom_call.1} parent=1 // pred_fallthru
      _
    // Predicated region
    $region30: #{tpu_custom_call.1} parent=1 // pred_check
      _
    $region31: #{tpu_custom_call.1} parent=1 // pred_check_branch
      %58 = sbr.rel (0) target = $region33
    $region32: #{tpu_custom_call.1} parent=1 // pred_region
      %59 = dma.done [#allocation6], 4096
    $region33: #{tpu_custom_call.1} parent=1 // pred_fallthru
      _
    %v61 = vld [vmem:[#allocation2] sm:$0xff]
    %v62 = vld [vmem:[#allocation2 + $0x8] sm:$0xff]
    %v63 = vpack.c.bf16 %v61, %v61
    %v64 = vpack.c.bf16 %v62, %v62
    %v65 = vld [vmem:[#allocation5] sm:$0xff]
    %v66 = vld [vmem:[#allocation5 + $0x8] sm:$0xff]
    %v67 = vld [vmem:[#allocation5 + $0x10] sm:$0xff]
    %v68 = vld [vmem:[#allocation5 + $0x18] sm:$0xff]
    %v69 = vld [vmem:[#allocation5 + $0x20] sm:$0xff]
    %v70 = vld [vmem:[#allocation5 + $0x28] sm:$0xff]
    %v71 = vld [vmem:[#allocation5 + $0x30] sm:$0xff]
    %v72 = vld [vmem:[#allocation5 + $0x38] sm:$0xff]
    %v73 = vld [vmem:[#allocation5 + $0x40] sm:$0xff]
    %v74 = vld [vmem:[#allocation5 + $0x48] sm:$0xff]
    %v75 = vld [vmem:[#allocation5 + $0x50] sm:$0xff]
    %v76 = vld [vmem:[#allocation5 + $0x58] sm:$0xff]
    %v77 = vld [vmem:[#allocation5 + $0x60] sm:$0xff]
    %v78 = vld [vmem:[#allocation5 + $0x68] sm:$0xff]
    %v79 = vld [vmem:[#allocation5 + $0x70] sm:$0xff]
    %v80 = vld [vmem:[#allocation5 + $0x78] sm:$0xff]
    %v81 = vld [vmem:[#allocation5 + $0x80] sm:$0xff]
    %v82 = vld [vmem:[#allocation5 + $0x88] sm:$0xff]
    %v83 = vld [vmem:[#allocation5 + $0x90] sm:$0xff]
    %v84 = vld [vmem:[#allocation5 + $0x98] sm:$0xff]
    %v85 = vld [vmem:[#allocation5 + $0xa0] sm:$0xff]
    %v86 = vld [vmem:[#allocation5 + $0xa8] sm:$0xff]
    %v87 = vld [vmem:[#allocation5 + $0xb0] sm:$0xff]
    %v88 = vld [vmem:[#allocation5 + $0xb8] sm:$0xff]
    %v89 = vld [vmem:[#allocation5 + $0xc0] sm:$0xff]
    %v90 = vld [vmem:[#allocation5 + $0xc8] sm:$0xff]
    %v91 = vld [vmem:[#allocation5 + $0xd0] sm:$0xff]
    %v92 = vld [vmem:[#allocation5 + $0xd8] sm:$0xff]
    %v93 = vld [vmem:[#allocation5 + $0xe0] sm:$0xff]
    %v94 = vld [vmem:[#allocation5 + $0xe8] sm:$0xff]
    %v95 = vld [vmem:[#allocation5 + $0xf0] sm:$0xff]
    %v96 = vld [vmem:[#allocation5 + $0xf8] sm:$0xff]
    %v97 = vld [vmem:[#allocation5 + $0x100] sm:$0xff]
    %v98 = vld [vmem:[#allocation5 + $0x108] sm:$0xff]
    %v99 = vld [vmem:[#allocation5 + $0x110] sm:$0xff]
    %v100 = vld [vmem:[#allocation5 + $0x118] sm:$0xff]
    %v101 = vld [vmem:[#allocation5 + $0x120] sm:$0xff]
    %v102 = vld [vmem:[#allocation5 + $0x128] sm:$0xff]
    %v103 = vld [vmem:[#allocation5 + $0x130] sm:$0xff]
    %v104 = vld [vmem:[#allocation5 + $0x138] sm:$0xff]
    %v105 = vld [vmem:[#allocation5 + $0x140] sm:$0xff]
    %v106 = vld [vmem:[#allocation5 + $0x148] sm:$0xff]
    %v107 = vld [vmem:[#allocation5 + $0x150] sm:$0xff]
    %v108 = vld [vmem:[#allocation5 + $0x158] sm:$0xff]
    %v109 = vld [vmem:[#allocation5 + $0x160] sm:$0xff]
    %v110 = vld [vmem:[#allocation5 + $0x168] sm:$0xff]
    %v111 = vld [vmem:[#allocation5 + $0x170] sm:$0xff]
    %v112 = vld [vmem:[#allocation5 + $0x178] sm:$0xff]
    %v113 = vld [vmem:[#allocation5 + $0x180] sm:$0xff]
    %v114 = vld [vmem:[#allocation5 + $0x188] sm:$0xff]
    %v115 = vld [vmem:[#allocation5 + $0x190] sm:$0xff]
    %v116 = vld [vmem:[#allocation5 + $0x198] sm:$0xff]
    %v117 = vld [vmem:[#allocation5 + $0x1a0] sm:$0xff]
    %v118 = vld [vmem:[#allocation5 + $0x1a8] sm:$0xff]
    %v119 = vld [vmem:[#allocation5 + $0x1b0] sm:$0xff]
    %v120 = vld [vmem:[#allocation5 + $0x1b8] sm:$0xff]
    %v121 = vld [vmem:[#allocation5 + $0x1c0] sm:$0xff]
    %v122 = vld [vmem:[#allocation5 + $0x1c8] sm:$0xff]
    %v123 = vld [vmem:[#allocation5 + $0x1d0] sm:$0xff]
    %v124 = vld [vmem:[#allocation5 + $0x1d8] sm:$0xff]
    %v125 = vld [vmem:[#allocation5 + $0x1e0] sm:$0xff]
    %v126 = vld [vmem:[#allocation5 + $0x1e8] sm:$0xff]
    %v127 = vld [vmem:[#allocation5 + $0x1f0] sm:$0xff]
    %v128 = vld [vmem:[#allocation5 + $0x1f8] sm:$0xff]
    %v129 = vld [vmem:[%s2] sm:$0xf]
    %v131 = vlaneseq
    %v132 = vshrl.u32 %v131, 7
    %v133 = vsub.s32 0, %v132
    %v134 = vrot.slane %v129, %v133
    %v135 = vlaneseq
    %v136 = vshrl.u32 %v135, 7
    %v137 = vsub.s32 1, %v136
    %v138 = vrot.slane %v129, %v137
    %v139 = vlaneseq
    %v140 = vshrl.u32 %v139, 7
    %v141 = vsub.s32 2, %v140
    %v142 = vrot.slane %v129, %v141
    %v143 = vlaneseq
    %v144 = vshrl.u32 %v143, 7
    %v145 = vsub.s32 3, %v144
    %v146 = vrot.slane %v129, %v145
    %v215 = vunpack.c.l.b16 %v65
    %v216 = vunpack.c.h.b16 %v65
    %v217 = vunpack.c.l.b16 %v66
    %v218 = vunpack.c.h.b16 %v66
    %v219 = vunpack.c.l.b16 %v67
    %v220 = vunpack.c.h.b16 %v67
    %v221 = vunpack.c.l.b16 %v68
    %v222 = vunpack.c.h.b16 %v68
    %v223 = vunpack.c.l.b16 %v69
    %v224 = vunpack.c.h.b16 %v69
    %v225 = vunpack.c.l.b16 %v70
    %v226 = vunpack.c.h.b16 %v70
    %v227 = vunpack.c.l.b16 %v71
    %v228 = vunpack.c.h.b16 %v71
    %v229 = vunpack.c.l.b16 %v72
    %v230 = vunpack.c.h.b16 %v72
    %v231 = vunpack.c.l.b16 %v73
    %v232 = vunpack.c.h.b16 %v73
    %v233 = vunpack.c.l.b16 %v74
    %v234 = vunpack.c.h.b16 %v74
    %v235 = vunpack.c.l.b16 %v75
    %v236 = vunpack.c.h.b16 %v75
    %v237 = vunpack.c.l.b16 %v76
    %v238 = vunpack.c.h.b16 %v76
    %v239 = vunpack.c.l.b16 %v77
    %v240 = vunpack.c.h.b16 %v77
    %v241 = vunpack.c.l.b16 %v78
    %v242 = vunpack.c.h.b16 %v78
    %v243 = vunpack.c.l.b16 %v79
    %v244 = vunpack.c.h.b16 %v79
    %v245 = vunpack.c.l.b16 %v80
    %v246 = vunpack.c.h.b16 %v80
    %v247 = vunpack.c.l.b16 %v81
    %v248 = vunpack.c.h.b16 %v81
    %v249 = vunpack.c.l.b16 %v82
    %v250 = vunpack.c.h.b16 %v82
    %v251 = vunpack.c.l.b16 %v83
    %v252 = vunpack.c.h.b16 %v83
    %v253 = vunpack.c.l.b16 %v84
    %v254 = vunpack.c.h.b16 %v84
    %v255 = vunpack.c.l.b16 %v85
    %v256 = vunpack.c.h.b16 %v85
    %v257 = vunpack.c.l.b16 %v86
    %v258 = vunpack.c.h.b16 %v86
    %v259 = vunpack.c.l.b16 %v87
    %v260 = vunpack.c.h.b16 %v87
    %v261 = vunpack.c.l.b16 %v88
    %v262 = vunpack.c.h.b16 %v88
    %v263 = vunpack.c.l.b16 %v89
    %v264 = vunpack.c.h.b16 %v89
    %v265 = vunpack.c.l.b16 %v90
    %v266 = vunpack.c.h.b16 %v90
    %v267 = vunpack.c.l.b16 %v91
    %v268 = vunpack.c.h.b16 %v91
    %v269 = vunpack.c.l.b16 %v92
    %v270 = vunpack.c.h.b16 %v92
    %v271 = vunpack.c.l.b16 %v93
    %v272 = vunpack.c.h.b16 %v93
    %v273 = vunpack.c.l.b16 %v94
    %v274 = vunpack.c.h.b16 %v94
    %v275 = vunpack.c.l.b16 %v95
    %v276 = vunpack.c.h.b16 %v95
    %v277 = vunpack.c.l.b16 %v96
    %v278 = vunpack.c.h.b16 %v96
    %v279 = vunpack.c.l.b16 %v97
    %v280 = vunpack.c.h.b16 %v97
    %v281 = vunpack.c.l.b16 %v98
    %v282 = vunpack.c.h.b16 %v98
    %v283 = vunpack.c.l.b16 %v99
    %v284 = vunpack.c.h.b16 %v99
    %v285 = vunpack.c.l.b16 %v100
    %v286 = vunpack.c.h.b16 %v100
    %v287 = vunpack.c.l.b16 %v101
    %v288 = vunpack.c.h.b16 %v101
    %v289 = vunpack.c.l.b16 %v102
    %v290 = vunpack.c.h.b16 %v102
    %v291 = vunpack.c.l.b16 %v103
    %v292 = vunpack.c.h.b16 %v103
    %v293 = vunpack.c.l.b16 %v104
    %v294 = vunpack.c.h.b16 %v104
    %v295 = vunpack.c.l.b16 %v105
    %v296 = vunpack.c.h.b16 %v105
    %v297 = vunpack.c.l.b16 %v106
    %v298 = vunpack.c.h.b16 %v106
    %v299 = vunpack.c.l.b16 %v107
    %v300 = vunpack.c.h.b16 %v107
    %v301 = vunpack.c.l.b16 %v108
    %v302 = vunpack.c.h.b16 %v108
    %v303 = vunpack.c.l.b16 %v109
    %v304 = vunpack.c.h.b16 %v109
    %v305 = vunpack.c.l.b16 %v110
    %v306 = vunpack.c.h.b16 %v110
    %v307 = vunpack.c.l.b16 %v111
    %v308 = vunpack.c.h.b16 %v111
    %v309 = vunpack.c.l.b16 %v112
    %v310 = vunpack.c.h.b16 %v112
    %v311 = vunpack.c.l.b16 %v113
    %v312 = vunpack.c.h.b16 %v113
    %v313 = vunpack.c.l.b16 %v114
    %v314 = vunpack.c.h.b16 %v114
    %v315 = vunpack.c.l.b16 %v115
    %v316 = vunpack.c.h.b16 %v115
    %v317 = vunpack.c.l.b16 %v116
    %v318 = vunpack.c.h.b16 %v116
    %v319 = vunpack.c.l.b16 %v117
    %v320 = vunpack.c.h.b16 %v117
    %v321 = vunpack.c.l.b16 %v118
    %v322 = vunpack.c.h.b16 %v118
    %v323 = vunpack.c.l.b16 %v119
    %v324 = vunpack.c.h.b16 %v119
    %v325 = vunpack.c.l.b16 %v120
    %v326 = vunpack.c.h.b16 %v120
    %v327 = vunpack.c.l.b16 %v121
    %v328 = vunpack.c.h.b16 %v121
    %v329 = vunpack.c.l.b16 %v122
    %v330 = vunpack.c.h.b16 %v122
    %v331 = vunpack.c.l.b16 %v123
    %v332 = vunpack.c.h.b16 %v123
    %v333 = vunpack.c.l.b16 %v124
    %v334 = vunpack.c.h.b16 %v124
    %v335 = vunpack.c.l.b16 %v125
    %v336 = vunpack.c.h.b16 %v125
    %v337 = vunpack.c.l.b16 %v126
    %v338 = vunpack.c.h.b16 %v126
    %v339 = vunpack.c.l.b16 %v127
    %v340 = vunpack.c.h.b16 %v127
    %v341 = vunpack.c.l.b16 %v128
    %v342 = vunpack.c.h.b16 %v128
    %v343 = vpack.c.b16 %v219, %v215
    %v344 = vpack.c.b16 %v220, %v216
    %v345 = vpack.c.b16 %v221, %v217
    %v346 = vpack.c.b16 %v222, %v218
    %v347 = vpack.c.b16 %v227, %v223
    %v348 = vpack.c.b16 %v228, %v224
    %v349 = vpack.c.b16 %v229, %v225
    %v350 = vpack.c.b16 %v230, %v226
    %v351 = vpack.c.b16 %v235, %v231
    %v352 = vpack.c.b16 %v236, %v232
    %v353 = vpack.c.b16 %v237, %v233
    %v354 = vpack.c.b16 %v238, %v234
    %v355 = vpack.c.b16 %v243, %v239
    %v356 = vpack.c.b16 %v244, %v240
    %v357 = vpack.c.b16 %v245, %v241
    %v358 = vpack.c.b16 %v246, %v242
    %v359 = vpack.c.b16 %v251, %v247
    %v360 = vpack.c.b16 %v252, %v248
    %v361 = vpack.c.b16 %v253, %v249
    %v362 = vpack.c.b16 %v254, %v250
    %v363 = vpack.c.b16 %v259, %v255
    %v364 = vpack.c.b16 %v260, %v256
    %v365 = vpack.c.b16 %v261, %v257
    %v366 = vpack.c.b16 %v262, %v258
    %v367 = vpack.c.b16 %v267, %v263
    %v368 = vpack.c.b16 %v268, %v264
    %v369 = vpack.c.b16 %v269, %v265
    %v370 = vpack.c.b16 %v270, %v266
    %v371 = vpack.c.b16 %v275, %v271
    %v372 = vpack.c.b16 %v276, %v272
    %v373 = vpack.c.b16 %v277, %v273
    %v374 = vpack.c.b16 %v278, %v274
    %v375 = vpack.c.b16 %v283, %v279
    %v376 = vpack.c.b16 %v284, %v280
    %v377 = vpack.c.b16 %v285, %v281
    %v378 = vpack.c.b16 %v286, %v282
    %v379 = vpack.c.b16 %v291, %v287
    %v380 = vpack.c.b16 %v292, %v288
    %v381 = vpack.c.b16 %v293, %v289
    %v382 = vpack.c.b16 %v294, %v290
    %v383 = vpack.c.b16 %v299, %v295
    %v384 = vpack.c.b16 %v300, %v296
    %v385 = vpack.c.b16 %v301, %v297
    %v386 = vpack.c.b16 %v302, %v298
    %v387 = vpack.c.b16 %v307, %v303
    %v388 = vpack.c.b16 %v308, %v304
    %v389 = vpack.c.b16 %v309, %v305
    %v390 = vpack.c.b16 %v310, %v306
    %v391 = vpack.c.b16 %v315, %v311
    %v392 = vpack.c.b16 %v316, %v312
    %v393 = vpack.c.b16 %v317, %v313
    %v394 = vpack.c.b16 %v318, %v314
    %v395 = vpack.c.b16 %v323, %v319
    %v396 = vpack.c.b16 %v324, %v320
    %v397 = vpack.c.b16 %v325, %v321
    %v398 = vpack.c.b16 %v326, %v322
    %v399 = vpack.c.b16 %v331, %v327
    %v400 = vpack.c.b16 %v332, %v328
    %v401 = vpack.c.b16 %v333, %v329
    %v402 = vpack.c.b16 %v334, %v330
    %v403 = vpack.c.b16 %v339, %v335
    %v404 = vpack.c.b16 %v340, %v336
    %v405 = vpack.c.b16 %v341, %v337
    %v406 = vpack.c.b16 %v342, %v338
    %471 = vmatprep.subr.bf16.mxu0 %v344
    %472 = vmatpush1.bf16.msra.mxu0 %v343
    %473 = vmatprep.subr.bf16.mxu0 %v348
    %474 = vmatpush1.bf16.msra.mxu0 %v347
    %475 = vmatprep.subr.bf16.mxu0 %v352
    %476 = vmatpush1.bf16.msra.mxu0 %v351
    %477 = vmatprep.subr.bf16.mxu0 %v356
    %478 = vmatpush1.bf16.msra.mxu0 %v355
    %479 = vmatprep.subr.bf16.mxu0 %v360
    %480 = vmatpush1.bf16.msra.mxu0 %v359
    %481 = vmatprep.subr.bf16.mxu0 %v364
    %482 = vmatpush1.bf16.msra.mxu0 %v363
    %483 = vmatprep.subr.bf16.mxu0 %v368
    %484 = vmatpush1.bf16.msra.mxu0 %v367
    %485 = vmatprep.subr.bf16.mxu0 %v372
    %486 = vmatpush1.bf16.msra.mxu0 %v371
    %487 = vmatprep.subr.bf16.mxu0 %v376
    %488 = vmatpush1.bf16.msra.mxu0 %v375
    %489 = vmatprep.subr.bf16.mxu0 %v380
    %490 = vmatpush1.bf16.msra.mxu0 %v379
    %491 = vmatprep.subr.bf16.mxu0 %v384
    %492 = vmatpush1.bf16.msra.mxu0 %v383
    %493 = vmatprep.subr.bf16.mxu0 %v388
    %494 = vmatpush1.bf16.msra.mxu0 %v387
    %495 = vmatprep.subr.bf16.mxu0 %v392
    %496 = vmatpush1.bf16.msra.mxu0 %v391
    %497 = vmatprep.subr.bf16.mxu0 %v396
    %498 = vmatpush1.bf16.msra.mxu0 %v395
    %499 = vmatprep.subr.bf16.mxu0 %v400
    %500 = vmatpush1.bf16.msra.mxu0 %v399
    %501 = vmatprep.subr.bf16.mxu0 %v404
    %502 = vmatpush1.bf16.msra.mxu0 %v403
    %503 = vmatprep.mubr.bf16.mxu0 %v64
    %504 = vmatmul.mubr.bf16.gmra.mrb[0].mxu0 %v63
    %v505 = vpop.f32.mrb[0].mxu0
    %v506 = vadd.f32 %v134, %v505
    %v507 = vpop.f32.mrb[0].mxu0
    %v508 = vadd.f32 %v138, %v507
    %v509 = vpop.f32.mrb[0].mxu0
    %v510 = vpop.f32.mrb[0].mxu0
    %511 = vdwg.mxu0
    %512 = vmatprep.subr.bf16.mxu0 %v346
    %513 = vmatpush1.bf16.msra.mxu0 %v345
    %514 = vmatprep.subr.bf16.mxu0 %v350
    %515 = vmatpush1.bf16.msra.mxu0 %v349
    %516 = vmatprep.subr.bf16.mxu0 %v354
    %517 = vmatpush1.bf16.msra.mxu0 %v353
    %518 = vmatprep.subr.bf16.mxu0 %v358
    %519 = vmatpush1.bf16.msra.mxu0 %v357
    %520 = vmatprep.subr.bf16.mxu0 %v362
    %521 = vmatpush1.bf16.msra.mxu0 %v361
    %522 = vmatprep.subr.bf16.mxu0 %v366
    %523 = vmatpush1.bf16.msra.mxu0 %v365
    %524 = vmatprep.subr.bf16.mxu0 %v370
    %525 = vmatpush1.bf16.msra.mxu0 %v369
    %526 = vmatprep.subr.bf16.mxu0 %v374
    %527 = vmatpush1.bf16.msra.mxu0 %v373
    %528 = vmatprep.subr.bf16.mxu0 %v378
    %529 = vmatpush1.bf16.msra.mxu0 %v377
    %530 = vmatprep.subr.bf16.mxu0 %v382
    %531 = vmatpush1.bf16.msra.mxu0 %v381
    %532 = vmatprep.subr.bf16.mxu0 %v386
    %533 = vmatpush1.bf16.msra.mxu0 %v385
    %534 = vmatprep.subr.bf16.mxu0 %v390
    %535 = vmatpush1.bf16.msra.mxu0 %v389
    %536 = vmatprep.subr.bf16.mxu0 %v394
    %537 = vmatpush1.bf16.msra.mxu0 %v393
    %538 = vmatprep.subr.bf16.mxu0 %v398
    %539 = vmatpush1.bf16.msra.mxu0 %v397
    %540 = vmatprep.subr.bf16.mxu0 %v402
    %541 = vmatpush1.bf16.msra.mxu0 %v401
    %542 = vmatprep.subr.bf16.mxu0 %v406
    %543 = vmatpush1.bf16.msra.mxu0 %v405
    %544 = vmatprep.mubr.bf16.mxu0 %v64
    %545 = vmatmul.mubr.bf16.gmra.mrb[0].mxu0 %v63
    %v546 = vpop.f32.mrb[0].mxu0
    %v547 = vadd.f32 %v142, %v546
    %v548 = vpop.f32.mrb[0].mxu0
    %v549 = vadd.f32 %v146, %v548
    %v550 = vpop.f32.mrb[0].mxu0
    %v551 = vpop.f32.mrb[0].mxu0
    %552 = vdwg.mxu0
    %v553 = vxor.u32 %v506, 2147483648
    %v554 = vxor.u32 %v508, 2147483648
    %v555 = vxor.u32 %v547, 2147483648
    %v556 = vxor.u32 %v549, 2147483648
    %v557 = vmul.f32 %v553, 1.442695
    %v558 = vpow.pop %v557
    %v559 = vmul.f32 %v554, 1.442695
    %v560 = vpow.pop %v559
    %v561 = vmul.f32 %v555, 1.442695
    %v562 = vpow.pop %v561
    %v563 = vmul.f32 %v556, 1.442695
    %v564 = vpow.pop %v563
    %v565 = vadd.f32 %v558, 1.0
    %v566 = vadd.f32 %v560, 1.0
    %v567 = vadd.f32 %v562, 1.0
    %v568 = vadd.f32 %v564, 1.0
    %v569 = vrcp.pop %v565
    %v570 = vmul.f32 1.0, %v569
    %v571 = vrcp.pop %v566
    %v572 = vmul.f32 1.0, %v571
    %v573 = vrcp.pop %v567
    %v574 = vmul.f32 1.0, %v573
    %v575 = vrcp.pop %v568
    %v576 = vmul.f32 1.0, %v575
    %v577 = vpack.c.bf16 %v570, %v570
    %v578 = vpack.c.bf16 %v572, %v572
    %v579 = vpack.c.bf16 %v574, %v574
    %v580 = vpack.c.bf16 %v576, %v576
    %v581 = vld [vmem:[#allocation7] sm:$0xf]
    %v582 = vld [vmem:[#allocation7 + $0x4] sm:$0xf]
    %v583 = vld [vmem:[#allocation7 + $0x8] sm:$0xf]
    %v584 = vld [vmem:[#allocation7 + $0xc] sm:$0xf]
    %v585 = vld [vmem:[#allocation7 + $0x10] sm:$0xf]
    %v586 = vld [vmem:[#allocation7 + $0x14] sm:$0xf]
    %v587 = vld [vmem:[#allocation7 + $0x18] sm:$0xf]
    %v588 = vld [vmem:[#allocation7 + $0x1c] sm:$0xf]
    %v589 = vld [vmem:[#allocation7 + $0x20] sm:$0xf]
    %v590 = vld [vmem:[#allocation7 + $0x24] sm:$0xf]
    %v591 = vld [vmem:[#allocation7 + $0x28] sm:$0xf]
    %v592 = vld [vmem:[#allocation7 + $0x2c] sm:$0xf]
    %v593 = vld [vmem:[#allocation7 + $0x30] sm:$0xf]
    %v594 = vld [vmem:[#allocation7 + $0x34] sm:$0xf]
    %v595 = vld [vmem:[#allocation7 + $0x38] sm:$0xf]
    %v596 = vld [vmem:[#allocation7 + $0x3c] sm:$0xf]
    %v597 = vld [vmem:[#allocation7 + $0x40] sm:$0xf]
    %v598 = vld [vmem:[#allocation7 + $0x44] sm:$0xf]
    %v599 = vld [vmem:[#allocation7 + $0x48] sm:$0xf]
    %v600 = vld [vmem:[#allocation7 + $0x4c] sm:$0xf]
    %v601 = vld [vmem:[#allocation7 + $0x50] sm:$0xf]
    %v602 = vld [vmem:[#allocation7 + $0x54] sm:$0xf]
    %v603 = vld [vmem:[#allocation7 + $0x58] sm:$0xf]
    %v604 = vld [vmem:[#allocation7 + $0x5c] sm:$0xf]
    %v605 = vld [vmem:[#allocation7 + $0x60] sm:$0xf]
    %v606 = vld [vmem:[#allocation7 + $0x64] sm:$0xf]
    %v607 = vld [vmem:[#allocation7 + $0x68] sm:$0xf]
    %v608 = vld [vmem:[#allocation7 + $0x6c] sm:$0xf]
    %v609 = vld [vmem:[#allocation7 + $0x70] sm:$0xf]
    %v610 = vld [vmem:[#allocation7 + $0x74] sm:$0xf]
    %v611 = vld [vmem:[#allocation7 + $0x78] sm:$0xf]
    %v612 = vld [vmem:[#allocation7 + $0x7c] sm:$0xf]
    %v613 = vld [vmem:[#allocation7 + $0x80] sm:$0xf]
    %v614 = vld [vmem:[#allocation7 + $0x84] sm:$0xf]
    %v615 = vld [vmem:[#allocation7 + $0x88] sm:$0xf]
    %v616 = vld [vmem:[#allocation7 + $0x8c] sm:$0xf]
    %v617 = vld [vmem:[#allocation7 + $0x90] sm:$0xf]
    %v618 = vld [vmem:[#allocation7 + $0x94] sm:$0xf]
    %v619 = vld [vmem:[#allocation7 + $0x98] sm:$0xf]
    %v620 = vld [vmem:[#allocation7 + $0x9c] sm:$0xf]
    %v621 = vld [vmem:[#allocation7 + $0xa0] sm:$0xf]
    %v622 = vld [vmem:[#allocation7 + $0xa4] sm:$0xf]
    %v623 = vld [vmem:[#allocation7 + $0xa8] sm:$0xf]
    %v624 = vld [vmem:[#allocation7 + $0xac] sm:$0xf]
    %v625 = vld [vmem:[#allocation7 + $0xb0] sm:$0xf]
    %v626 = vld [vmem:[#allocation7 + $0xb4] sm:$0xf]
    %v627 = vld [vmem:[#allocation7 + $0xb8] sm:$0xf]
    %v628 = vld [vmem:[#allocation7 + $0xbc] sm:$0xf]
    %v629 = vld [vmem:[#allocation7 + $0xc0] sm:$0xf]
    %v630 = vld [vmem:[#allocation7 + $0xc4] sm:$0xf]
    %v631 = vld [vmem:[#allocation7 + $0xc8] sm:$0xf]
    %v632 = vld [vmem:[#allocation7 + $0xcc] sm:$0xf]
    %v633 = vld [vmem:[#allocation7 + $0xd0] sm:$0xf]
    %v634 = vld [vmem:[#allocation7 + $0xd4] sm:$0xf]
    %v635 = vld [vmem:[#allocation7 + $0xd8] sm:$0xf]
    %v636 = vld [vmem:[#allocation7 + $0xdc] sm:$0xf]
    %v637 = vld [vmem:[#allocation7 + $0xe0] sm:$0xf]
    %v638 = vld [vmem:[#allocation7 + $0xe4] sm:$0xf]
    %v639 = vld [vmem:[#allocation7 + $0xe8] sm:$0xf]
    %v640 = vld [vmem:[#allocation7 + $0xec] sm:$0xf]
    %v641 = vld [vmem:[#allocation7 + $0xf0] sm:$0xf]
    %v642 = vld [vmem:[#allocation7 + $0xf4] sm:$0xf]
    %v643 = vld [vmem:[#allocation7 + $0xf8] sm:$0xf]
    %v644 = vld [vmem:[#allocation7 + $0xfc] sm:$0xf]
    %v645 = vld [vmem:[%s4] sm:$0x1]
    %v647 = vlaneseq
    %v648 = vshrl.u32 %v647, 7
    %v649 = vsub.s32 0, %v648
    %v650 = vrot.slane %v645, %v649
    %v716 = vunpack.c.l.b16 %v581
    %v717 = vunpack.c.l.b16 %v582
    %v718 = vunpack.c.l.b16 %v583
    %v719 = vunpack.c.l.b16 %v584
    %v720 = vunpack.c.l.b16 %v585
    %v721 = vunpack.c.l.b16 %v586
    %v722 = vunpack.c.l.b16 %v587
    %v723 = vunpack.c.l.b16 %v588
    %v724 = vunpack.c.l.b16 %v589
    %v725 = vunpack.c.l.b16 %v590
    %v726 = vunpack.c.l.b16 %v591
    %v727 = vunpack.c.l.b16 %v592
    %v728 = vunpack.c.l.b16 %v593
    %v729 = vunpack.c.l.b16 %v594
    %v730 = vunpack.c.l.b16 %v595
    %v731 = vunpack.c.l.b16 %v596
    %v732 = vunpack.c.l.b16 %v597
    %v733 = vunpack.c.l.b16 %v598
    %v734 = vunpack.c.l.b16 %v599
    %v735 = vunpack.c.l.b16 %v600
    %v736 = vunpack.c.l.b16 %v601
    %v737 = vunpack.c.l.b16 %v602
    %v738 = vunpack.c.l.b16 %v603
    %v739 = vunpack.c.l.b16 %v604
    %v740 = vunpack.c.l.b16 %v605
    %v741 = vunpack.c.l.b16 %v606
    %v742 = vunpack.c.l.b16 %v607
    %v743 = vunpack.c.l.b16 %v608
    %v744 = vunpack.c.l.b16 %v609
    %v745 = vunpack.c.l.b16 %v610
    %v746 = vunpack.c.l.b16 %v611
    %v747 = vunpack.c.l.b16 %v612
    %v748 = vunpack.c.l.b16 %v613
    %v749 = vunpack.c.l.b16 %v614
    %v750 = vunpack.c.l.b16 %v615
    %v751 = vunpack.c.l.b16 %v616
    %v752 = vunpack.c.l.b16 %v617
    %v753 = vunpack.c.l.b16 %v618
    %v754 = vunpack.c.l.b16 %v619
    %v755 = vunpack.c.l.b16 %v620
    %v756 = vunpack.c.l.b16 %v621
    %v757 = vunpack.c.l.b16 %v622
    %v758 = vunpack.c.l.b16 %v623
    %v759 = vunpack.c.l.b16 %v624
    %v760 = vunpack.c.l.b16 %v625
    %v761 = vunpack.c.l.b16 %v626
    %v762 = vunpack.c.l.b16 %v627
    %v763 = vunpack.c.l.b16 %v628
    %v764 = vunpack.c.l.b16 %v629
    %v765 = vunpack.c.l.b16 %v630
    %v766 = vunpack.c.l.b16 %v631
    %v767 = vunpack.c.l.b16 %v632
    %v768 = vunpack.c.l.b16 %v633
    %v769 = vunpack.c.l.b16 %v634
    %v770 = vunpack.c.l.b16 %v635
    %v771 = vunpack.c.l.b16 %v636
    %v772 = vunpack.c.l.b16 %v637
    %v773 = vunpack.c.l.b16 %v638
    %v774 = vunpack.c.l.b16 %v639
    %v775 = vunpack.c.l.b16 %v640
    %v776 = vunpack.c.l.b16 %v641
    %v777 = vunpack.c.l.b16 %v642
    %v778 = vunpack.c.l.b16 %v643
    %v779 = vunpack.c.l.b16 %v644
    %v780 = vpack.c.b16 %v717, %v716
    %v781 = vpack.c.b16 %v719, %v718
    %v782 = vpack.c.b16 %v721, %v720
    %v783 = vpack.c.b16 %v723, %v722
    %v784 = vpack.c.b16 %v725, %v724
    %v785 = vpack.c.b16 %v727, %v726
    %v786 = vpack.c.b16 %v729, %v728
    %v787 = vpack.c.b16 %v731, %v730
    %v788 = vpack.c.b16 %v733, %v732
    %v789 = vpack.c.b16 %v735, %v734
    %v790 = vpack.c.b16 %v737, %v736
    %v791 = vpack.c.b16 %v739, %v738
    %v792 = vpack.c.b16 %v741, %v740
    %v793 = vpack.c.b16 %v743, %v742
    %v794 = vpack.c.b16 %v745, %v744
    %v795 = vpack.c.b16 %v747, %v746
    %v796 = vpack.c.b16 %v749, %v748
    %v797 = vpack.c.b16 %v751, %v750
    %v798 = vpack.c.b16 %v753, %v752
    %v799 = vpack.c.b16 %v755, %v754
    %v800 = vpack.c.b16 %v757, %v756
    %v801 = vpack.c.b16 %v759, %v758
    %v802 = vpack.c.b16 %v761, %v760
    %v803 = vpack.c.b16 %v763, %v762
    %v804 = vpack.c.b16 %v765, %v764
    %v805 = vpack.c.b16 %v767, %v766
    %v806 = vpack.c.b16 %v769, %v768
    %v807 = vpack.c.b16 %v771, %v770
    %v808 = vpack.c.b16 %v773, %v772
    %v809 = vpack.c.b16 %v775, %v774
    %v810 = vpack.c.b16 %v777, %v776
    %v811 = vpack.c.b16 %v779, %v778
    %844 = vmatprep.subr.bf16.mxu0 0
    %845 = vmatpush1.bf16.msra.mxu0 %v780
    %846 = vmatprep.subr.bf16.mxu0 0
    %847 = vmatpush1.bf16.msra.mxu0 %v781
    %848 = vmatprep.subr.bf16.mxu0 0
    %849 = vmatpush1.bf16.msra.mxu0 %v782
    %850 = vmatprep.subr.bf16.mxu0 0
    %851 = vmatpush1.bf16.msra.mxu0 %v783
    %852 = vmatprep.subr.bf16.mxu0 0
    %853 = vmatpush1.bf16.msra.mxu0 %v784
    %854 = vmatprep.subr.bf16.mxu0 0
    %855 = vmatpush1.bf16.msra.mxu0 %v785
    %856 = vmatprep.subr.bf16.mxu0 0
    %857 = vmatpush1.bf16.msra.mxu0 %v786
    %858 = vmatprep.subr.bf16.mxu0 0
    %859 = vmatpush1.bf16.msra.mxu0 %v787
    %860 = vmatprep.subr.bf16.mxu0 0
    %861 = vmatpush1.bf16.msra.mxu0 %v788
    %862 = vmatprep.subr.bf16.mxu0 0
    %863 = vmatpush1.bf16.msra.mxu0 %v789
    %864 = vmatprep.subr.bf16.mxu0 0
    %865 = vmatpush1.bf16.msra.mxu0 %v790
    %866 = vmatprep.subr.bf16.mxu0 0
    %867 = vmatpush1.bf16.msra.mxu0 %v791
    %868 = vmatprep.subr.bf16.mxu0 0
    %869 = vmatpush1.bf16.msra.mxu0 %v792
    %870 = vmatprep.subr.bf16.mxu0 0
    %871 = vmatpush1.bf16.msra.mxu0 %v793
    %872 = vmatprep.subr.bf16.mxu0 0
    %873 = vmatpush1.bf16.msra.mxu0 %v794
    %874 = vmatprep.subr.bf16.mxu0 0
    %875 = vmatpush1.bf16.msra.mxu0 %v795
    %876 = vmatprep.mubr.bf16.mxu0 %v578
    %877 = vmatmul.mubr.bf16.gmra.mrb[0].mxu0 %v577
    %v878 = vpop.f32.mrb[0].mxu0
    %v879 = vadd.f32 %v650, %v878
    %v880 = vpop.f32.mrb[0].mxu0
    %v881 = vpop.f32.mrb[0].mxu0
    %v882 = vpop.f32.mrb[0].mxu0
    %883 = vdwg.mxu0
    %884 = vmatprep.subr.bf16.mxu0 0
    %885 = vmatpush1.bf16.msra.mxu0 %v796
    %886 = vmatprep.subr.bf16.mxu0 0
    %887 = vmatpush1.bf16.msra.mxu0 %v797
    %888 = vmatprep.subr.bf16.mxu0 0
    %889 = vmatpush1.bf16.msra.mxu0 %v798
    %890 = vmatprep.subr.bf16.mxu0 0
    %891 = vmatpush1.bf16.msra.mxu0 %v799
    %892 = vmatprep.subr.bf16.mxu0 0
    %893 = vmatpush1.bf16.msra.mxu0 %v800
    %894 = vmatprep.subr.bf16.mxu0 0
    %895 = vmatpush1.bf16.msra.mxu0 %v801
    %896 = vmatprep.subr.bf16.mxu0 0
    %897 = vmatpush1.bf16.msra.mxu0 %v802
    %898 = vmatprep.subr.bf16.mxu0 0
    %899 = vmatpush1.bf16.msra.mxu0 %v803
    %900 = vmatprep.subr.bf16.mxu0 0
    %901 = vmatpush1.bf16.msra.mxu0 %v804
    %902 = vmatprep.subr.bf16.mxu0 0
    %903 = vmatpush1.bf16.msra.mxu0 %v805
    %904 = vmatprep.subr.bf16.mxu0 0
    %905 = vmatpush1.bf16.msra.mxu0 %v806
    %906 = vmatprep.subr.bf16.mxu0 0
    %907 = vmatpush1.bf16.msra.mxu0 %v807
    %908 = vmatprep.subr.bf16.mxu0 0
    %909 = vmatpush1.bf16.msra.mxu0 %v808
    %910 = vmatprep.subr.bf16.mxu0 0
    %911 = vmatpush1.bf16.msra.mxu0 %v809
    %912 = vmatprep.subr.bf16.mxu0 0
    %913 = vmatpush1.bf16.msra.mxu0 %v810
    %914 = vmatprep.subr.bf16.mxu0 0
    %915 = vmatpush1.bf16.msra.mxu0 %v811
    %916 = vmatprep.mubr.bf16.mxu0 %v580
    %917 = vmatmul.mubr.bf16.gmra.mrb[0].mxu0 %v579
    %v918 = vpop.f32.mrb[0].mxu0
    %v919 = vadd.f32 %v879, %v918
    %v920 = vpop.f32.mrb[0].mxu0
    %v921 = vpop.f32.mrb[0].mxu0
    %v922 = vpop.f32.mrb[0].mxu0
    %923 = vdwg.mxu0
    %924 = vst [vmem:[#allocation8] sm:$0xff] %v919
    // Predicated region
    $region34: #{tpu_custom_call.1} parent=1 // pred_check
      _
    $region35: #{tpu_custom_call.1} parent=1 // pred_check_branch
      %926 = sbr.rel (0) target = $region37
    $region36: #{tpu_custom_call.1} parent=1 // pred_region
      %s928 = ssub.s32 128, 128
      %929 = vsyncadd [#allocation4], %s928
      %s931 = sshll.u32 [#allocation8], 4
      %s932 = int_to_ptr.vmem [resolvable:$true] %s931
      %934 = dma.vmem_to_hbm [thread:$0]  %s932, 128, %s5, [#allocation4]
    $region37: #{tpu_custom_call.1} parent=1 // pred_fallthru
      _
    // Predicated region
    $region38: #{tpu_custom_call.1} parent=1 // pred_check
      _
    $region39: #{tpu_custom_call.1} parent=1 // pred_check_branch
      %936 = sbr.rel (0) target = $region41
    $region40: #{tpu_custom_call.1} parent=1 // pred_region
      %937 = dma.done [#allocation4], 128
    $region41: #{tpu_custom_call.1} parent=1 // pred_fallthru
      _
    %938 = vsyncpa [#allocation3], 1
    %939 = vsyncpa [#allocation6], 1
    %940 = vsyncpa [#allocation4], 1

</llo_original>
